<compile_context>
chip_gen: v7x
topology: tpu7x:2x2x1
jax: 0.10.0
libtpu: 0.0.40
codegen_flags: <defaults>
</compile_context>

<pallas_src>
import functools

import jax
import jax.numpy as jnp
from jax.experimental import pallas as pl
from jax.experimental.pallas import tpu as pltpu


def _round_up(x, m):
    return ((x + m - 1) // m) * m


def _basic_block_kernel(x_ref, w_ref, scale_ref, shift_ref, o_ref, *,
                        width, ksize, activation):
    # x_ref:     (Bb, Cin, HWp)    flattened+padded input pixels (lane-dense)
    # w_ref:     (K*K, Cout, Cin)  one (Cout,Cin) matrix per conv tap
    # scale_ref: (Cout, 1)         folded BN scale   (gamma / sqrt(var+eps))
    # shift_ref: (Cout, 1)         folded BN shift   (beta - mean*scale)
    # o_ref:     (Bb, Cout, Npix)  flattened conv output (lane-dense)
    bb, cout, n_out = o_ref.shape
    scale = scale_ref[...]                       # (Cout, 1) column -> free broadcast
    shift = shift_ref[...]

    for bi in range(bb):                         # static unroll over batch sub-block
        acc = jnp.zeros((cout, n_out), jnp.float32)
        for kh in range(ksize):
            for kw in range(ksize):
                d = kh * width + kw              # static lane offset for this tap
                patch = x_ref[bi, :, pl.ds(d, n_out)]          # (Cin, Npix)
                acc = acc + jnp.dot(w_ref[kh * ksize + kw], patch,
                                    preferred_element_type=jnp.float32)
        y = acc * scale + shift                  # fused BatchNorm (inference mode)
        if activation:
            y = y * jax.nn.sigmoid(y)            # SiLU
        o_ref[bi] = y.astype(o_ref.dtype)


def basic_block_forward(x, conv_w, bn_gamma, bn_beta, bn_mean, bn_var, *,
                        eps=1e-5, activation=True, block_batch=1):
    """x: (B, Cin, H, W); conv_w: (Cout, Cin, K, K) (PyTorch layout), stride=1, pad=0."""
    B, Cin, H, W = x.shape
    Cout, Cin_w, K, K2 = conv_w.shape
    assert Cin_w == Cin and K == K2
    Ho, Wo = H - K + 1, W - K + 1
    assert Ho > 0 and Wo > 0
    assert B % block_batch == 0

    # Lane-dense sizing: output pixel axis and (shift-extended) input pixel axis
    # both padded to multiples of 128.
    n_out = _round_up(Ho * W, 128)
    d_max = (K - 1) * W + (K - 1)
    hwp = _round_up(n_out + d_max, 128)

    x_flat = jnp.pad(x.reshape(B, Cin, H * W), ((0, 0), (0, 0), (0, hwp - H * W)))
    # (Cout, Cin, K, K) -> (K*K, Cout, Cin): one weight matrix per tap.
    w_taps = jnp.transpose(conv_w, (2, 3, 0, 1)).reshape(K * K, Cout, Cin)
    # Fold BatchNorm into per-channel columns (no in-kernel transposes).
    inv_std = 1.0 / jnp.sqrt(bn_var + eps)
    scale = (bn_gamma * inv_std).reshape(Cout, 1).astype(jnp.float32)
    shift = (bn_beta - bn_mean * bn_gamma * inv_std).reshape(Cout, 1).astype(jnp.float32)

    kernel = functools.partial(_basic_block_kernel, width=W, ksize=K,
                               activation=activation)

    out_flat = pl.pallas_call(
        kernel,
        out_shape=jax.ShapeDtypeStruct((B, Cout, n_out), x.dtype),
        grid_spec=pltpu.PrefetchScalarGridSpec(
            num_scalar_prefetch=0,
            grid=(B // block_batch,),
            in_specs=[
                pl.BlockSpec((block_batch, Cin, hwp), lambda b: (b, 0, 0)),
                pl.BlockSpec((K * K, Cout, Cin), lambda b: (0, 0, 0)),
                pl.BlockSpec((Cout, 1), lambda b: (0, 0)),
                pl.BlockSpec((Cout, 1), lambda b: (0, 0)),
            ],
            out_specs=pl.BlockSpec((block_batch, Cout, n_out), lambda b: (b, 0, 0)),
        ),
        compiler_params=pltpu.CompilerParams(
            dimension_semantics=("parallel",)),
    )(x_flat, w_taps, scale, shift)

    # Crop the valid conv window out of the flattened output.
    out = out_flat[:, :, :Ho * W].reshape(B, Cout, Ho, W)[:, :, :, :Wo]
    return out


def basic_block_reference(x, conv_w, gamma, beta, mean, var, eps=1e-5, activation=True):
    """Pure-JAX reference mirroring the PyTorch forward (eval-mode BN)."""
    y = jax.lax.conv_general_dilated(
        x, conv_w, window_strides=(1, 1), padding="VALID",
        dimension_numbers=("NCHW", "OIHW", "NCHW"),
        precision=jax.lax.Precision.HIGHEST)
    inv_std = 1.0 / jnp.sqrt(var + eps)
    sc = (gamma * inv_std)[None, :, None, None]
    sh = (beta - mean * gamma * inv_std)[None, :, None, None]
    y = y * sc + sh
    if activation:
        y = y * jax.nn.sigmoid(y)
    return y


if __name__ == "__main__":
    B, Cin, Cout, H, W, K = 2, 4, 8, 16, 16, 3

    key = jax.random.PRNGKey(0)
    kx, kw, kg, kb, km, kv = jax.random.split(key, 6)

    x = jax.random.normal(kx, (B, Cin, H, W), dtype=jnp.float32)
    conv_w = jax.random.normal(kw, (Cout, Cin, K, K), dtype=jnp.float32) * 0.1
    gamma = 1.0 + 0.1 * jax.random.normal(kg, (Cout,), dtype=jnp.float32)
    beta = 0.1 * jax.random.normal(kb, (Cout,), dtype=jnp.float32)
    mean = 0.1 * jax.random.normal(km, (Cout,), dtype=jnp.float32)
    var = jnp.abs(jax.random.normal(kv, (Cout,), dtype=jnp.float32)) + 0.5

    out = basic_block_forward(x, conv_w, gamma, beta, mean, var)
    out = jax.block_until_ready(out)

    ref = basic_block_reference(x, conv_w, gamma, beta, mean, var)
    assert out.shape == (B, Cout, H - K + 1, W - K + 1) and out.dtype == x.dtype
    assert jnp.allclose(out, ref, atol=1e-2, rtol=1e-2), (
        "mismatch vs reference, max abs diff = %s" % jnp.max(jnp.abs(out - ref)))

    print("KERNEL_OK")
</pallas_src>

<mosaic_0001>
module attributes {stable_mosaic.version = 11 : i64} {
  func.func @_basic_block_kernel(%arg0: i32, %arg1: memref<1x4x384xf32, #tpu.memory_space<vmem>>, %arg2: memref<9x8x4xf32, #tpu.memory_space<vmem>>, %arg3: memref<8x1xf32, #tpu.memory_space<vmem>>, %arg4: memref<8x1xf32, #tpu.memory_space<vmem>>, %arg5: memref<1x8x256xf32, #tpu.memory_space<vmem>>) attributes {dimension_semantics = [#tpu.dimension_semantics<parallel>], iteration_bounds = array<i64: 2>, scalar_prefetch = 0 : i64, scratch_operands = 0 : i64, tpu.core_type = #tpu.core_type<tc>, window_params = [{transform_indices = @transform_0, window_bounds = array<i64: 1, 4, 384>}, {pipeline_mode = #tpu.pipeline_mode<synchronous>, transform_indices = @transform_1, window_bounds = array<i64: 9, 8, 4>}, {pipeline_mode = #tpu.pipeline_mode<synchronous>, transform_indices = @transform_2, window_bounds = array<i64: 8, 1>}, {pipeline_mode = #tpu.pipeline_mode<synchronous>, transform_indices = @transform_3, window_bounds = array<i64: 8, 1>}, {transform_indices = @transform_4, window_bounds = array<i64: 1, 8, 256>}]} {
    %c0 = arith.constant 0 : index
    %c0_0 = arith.constant 0 : index
    %0 = vector.load %arg3[%c0, %c0_0] : memref<8x1xf32, #tpu.memory_space<vmem>>, vector<8x1xf32>
    %c0_1 = arith.constant 0 : index
    %c0_2 = arith.constant 0 : index
    %1 = vector.load %arg4[%c0_1, %c0_2] : memref<8x1xf32, #tpu.memory_space<vmem>>, vector<8x1xf32>
    %cst = arith.constant 0.000000e+00 : f32
    %2 = vector.broadcast %cst : f32 to vector<8x256xf32>
    %c0_3 = arith.constant 0 : index
    %c0_4 = arith.constant 0 : index
    %c0_5 = arith.constant 0 : index
    %3 = vector.load %arg1[%c0_3, %c0_4, %c0_5] : memref<1x4x384xf32, #tpu.memory_space<vmem>>, vector<1x4x256xf32>
    %4 = vector.shape_cast %3 : vector<1x4x256xf32> to vector<4x256xf32>
    %c0_6 = arith.constant 0 : index
    %c0_7 = arith.constant 0 : index
    %c0_8 = arith.constant 0 : index
    %5 = vector.load %arg2[%c0_6, %c0_7, %c0_8] : memref<9x8x4xf32, #tpu.memory_space<vmem>>, vector<1x8x4xf32>
    %6 = vector.shape_cast %5 : vector<1x8x4xf32> to vector<8x4xf32>
    %cst_9 = arith.constant dense<0.000000e+00> : vector<8x256xf32>
    %7 = tpu.matmul %6, %4, %cst_9 {dimension_numbers = #tpu.dot_dimension_numbers<[1], [0], [0], [1], [0, 0, 1, 1], [], []>} : vector<8x4xf32>, vector<4x256xf32>, vector<8x256xf32> -> vector<8x256xf32>
    %8 = arith.addf %2, %7 : vector<8x256xf32>
    %c0_10 = arith.constant 0 : index
    %c0_11 = arith.constant 0 : index
    %c1 = arith.constant 1 : index
    %9 = vector.load %arg1[%c0_10, %c0_11, %c1] : memref<1x4x384xf32, #tpu.memory_space<vmem>>, vector<1x4x256xf32>
    %10 = vector.shape_cast %9 : vector<1x4x256xf32> to vector<4x256xf32>
    %c1_12 = arith.constant 1 : index
    %c0_13 = arith.constant 0 : index
    %c0_14 = arith.constant 0 : index
    %11 = vector.load %arg2[%c1_12, %c0_13, %c0_14] : memref<9x8x4xf32, #tpu.memory_space<vmem>>, vector<1x8x4xf32>
    %12 = vector.shape_cast %11 : vector<1x8x4xf32> to vector<8x4xf32>
    %cst_15 = arith.constant dense<0.000000e+00> : vector<8x256xf32>
    %13 = tpu.matmul %12, %10, %cst_15 {dimension_numbers = #tpu.dot_dimension_numbers<[1], [0], [0], [1], [0, 0, 1, 1], [], []>} : vector<8x4xf32>, vector<4x256xf32>, vector<8x256xf32> -> vector<8x256xf32>
    %14 = arith.addf %8, %13 : vector<8x256xf32>
    %c0_16 = arith.constant 0 : index
    %c0_17 = arith.constant 0 : index
    %c2 = arith.constant 2 : index
    %15 = vector.load %arg1[%c0_16, %c0_17, %c2] : memref<1x4x384xf32, #tpu.memory_space<vmem>>, vector<1x4x256xf32>
    %16 = vector.shape_cast %15 : vector<1x4x256xf32> to vector<4x256xf32>
    %c2_18 = arith.constant 2 : index
    %c0_19 = arith.constant 0 : index
    %c0_20 = arith.constant 0 : index
    %17 = vector.load %arg2[%c2_18, %c0_19, %c0_20] : memref<9x8x4xf32, #tpu.memory_space<vmem>>, vector<1x8x4xf32>
    %18 = vector.shape_cast %17 : vector<1x8x4xf32> to vector<8x4xf32>
    %cst_21 = arith.constant dense<0.000000e+00> : vector<8x256xf32>
    %19 = tpu.matmul %18, %16, %cst_21 {dimension_numbers = #tpu.dot_dimension_numbers<[1], [0], [0], [1], [0, 0, 1, 1], [], []>} : vector<8x4xf32>, vector<4x256xf32>, vector<8x256xf32> -> vector<8x256xf32>
    %20 = arith.addf %14, %19 : vector<8x256xf32>
    %c0_22 = arith.constant 0 : index
    %c0_23 = arith.constant 0 : index
    %c16 = arith.constant 16 : index
    %21 = vector.load %arg1[%c0_22, %c0_23, %c16] : memref<1x4x384xf32, #tpu.memory_space<vmem>>, vector<1x4x256xf32>
    %22 = vector.shape_cast %21 : vector<1x4x256xf32> to vector<4x256xf32>
    %c3 = arith.constant 3 : index
    %c0_24 = arith.constant 0 : index
    %c0_25 = arith.constant 0 : index
    %23 = vector.load %arg2[%c3, %c0_24, %c0_25] : memref<9x8x4xf32, #tpu.memory_space<vmem>>, vector<1x8x4xf32>
    %24 = vector.shape_cast %23 : vector<1x8x4xf32> to vector<8x4xf32>
    %cst_26 = arith.constant dense<0.000000e+00> : vector<8x256xf32>
    %25 = tpu.matmul %24, %22, %cst_26 {dimension_numbers = #tpu.dot_dimension_numbers<[1], [0], [0], [1], [0, 0, 1, 1], [], []>} : vector<8x4xf32>, vector<4x256xf32>, vector<8x256xf32> -> vector<8x256xf32>
    %26 = arith.addf %20, %25 : vector<8x256xf32>
    %c0_27 = arith.constant 0 : index
    %c0_28 = arith.constant 0 : index
    %c17 = arith.constant 17 : index
    %27 = vector.load %arg1[%c0_27, %c0_28, %c17] : memref<1x4x384xf32, #tpu.memory_space<vmem>>, vector<1x4x256xf32>
    %28 = vector.shape_cast %27 : vector<1x4x256xf32> to vector<4x256xf32>
    %c4 = arith.constant 4 : index
    %c0_29 = arith.constant 0 : index
    %c0_30 = arith.constant 0 : index
    %29 = vector.load %arg2[%c4, %c0_29, %c0_30] : memref<9x8x4xf32, #tpu.memory_space<vmem>>, vector<1x8x4xf32>
    %30 = vector.shape_cast %29 : vector<1x8x4xf32> to vector<8x4xf32>
    %cst_31 = arith.constant dense<0.000000e+00> : vector<8x256xf32>
    %31 = tpu.matmul %30, %28, %cst_31 {dimension_numbers = #tpu.dot_dimension_numbers<[1], [0], [0], [1], [0, 0, 1, 1], [], []>} : vector<8x4xf32>, vector<4x256xf32>, vector<8x256xf32> -> vector<8x256xf32>
    %32 = arith.addf %26, %31 : vector<8x256xf32>
    %c0_32 = arith.constant 0 : index
    %c0_33 = arith.constant 0 : index
    %c18 = arith.constant 18 : index
    %33 = vector.load %arg1[%c0_32, %c0_33, %c18] : memref<1x4x384xf32, #tpu.memory_space<vmem>>, vector<1x4x256xf32>
    %34 = vector.shape_cast %33 : vector<1x4x256xf32> to vector<4x256xf32>
    %c5 = arith.constant 5 : index
    %c0_34 = arith.constant 0 : index
    %c0_35 = arith.constant 0 : index
    %35 = vector.load %arg2[%c5, %c0_34, %c0_35] : memref<9x8x4xf32, #tpu.memory_space<vmem>>, vector<1x8x4xf32>
    %36 = vector.shape_cast %35 : vector<1x8x4xf32> to vector<8x4xf32>
    %cst_36 = arith.constant dense<0.000000e+00> : vector<8x256xf32>
    %37 = tpu.matmul %36, %34, %cst_36 {dimension_numbers = #tpu.dot_dimension_numbers<[1], [0], [0], [1], [0, 0, 1, 1], [], []>} : vector<8x4xf32>, vector<4x256xf32>, vector<8x256xf32> -> vector<8x256xf32>
    %38 = arith.addf %32, %37 : vector<8x256xf32>
    %c0_37 = arith.constant 0 : index
    %c0_38 = arith.constant 0 : index
    %c32 = arith.constant 32 : index
    %39 = vector.load %arg1[%c0_37, %c0_38, %c32] : memref<1x4x384xf32, #tpu.memory_space<vmem>>, vector<1x4x256xf32>
    %40 = vector.shape_cast %39 : vector<1x4x256xf32> to vector<4x256xf32>
    %c6 = arith.constant 6 : index
    %c0_39 = arith.constant 0 : index
    %c0_40 = arith.constant 0 : index
    %41 = vector.load %arg2[%c6, %c0_39, %c0_40] : memref<9x8x4xf32, #tpu.memory_space<vmem>>, vector<1x8x4xf32>
    %42 = vector.shape_cast %41 : vector<1x8x4xf32> to vector<8x4xf32>
    %cst_41 = arith.constant dense<0.000000e+00> : vector<8x256xf32>
    %43 = tpu.matmul %42, %40, %cst_41 {dimension_numbers = #tpu.dot_dimension_numbers<[1], [0], [0], [1], [0, 0, 1, 1], [], []>} : vector<8x4xf32>, vector<4x256xf32>, vector<8x256xf32> -> vector<8x256xf32>
    %44 = arith.addf %38, %43 : vector<8x256xf32>
    %c0_42 = arith.constant 0 : index
    %c0_43 = arith.constant 0 : index
    %c33 = arith.constant 33 : index
    %45 = vector.load %arg1[%c0_42, %c0_43, %c33] : memref<1x4x384xf32, #tpu.memory_space<vmem>>, vector<1x4x256xf32>
    %46 = vector.shape_cast %45 : vector<1x4x256xf32> to vector<4x256xf32>
    %c7 = arith.constant 7 : index
    %c0_44 = arith.constant 0 : index
    %c0_45 = arith.constant 0 : index
    %47 = vector.load %arg2[%c7, %c0_44, %c0_45] : memref<9x8x4xf32, #tpu.memory_space<vmem>>, vector<1x8x4xf32>
    %48 = vector.shape_cast %47 : vector<1x8x4xf32> to vector<8x4xf32>
    %cst_46 = arith.constant dense<0.000000e+00> : vector<8x256xf32>
    %49 = tpu.matmul %48, %46, %cst_46 {dimension_numbers = #tpu.dot_dimension_numbers<[1], [0], [0], [1], [0, 0, 1, 1], [], []>} : vector<8x4xf32>, vector<4x256xf32>, vector<8x256xf32> -> vector<8x256xf32>
    %50 = arith.addf %44, %49 : vector<8x256xf32>
    %c0_47 = arith.constant 0 : index
    %c0_48 = arith.constant 0 : index
    %c34 = arith.constant 34 : index
    %51 = vector.load %arg1[%c0_47, %c0_48, %c34] : memref<1x4x384xf32, #tpu.memory_space<vmem>>, vector<1x4x256xf32>
    %52 = vector.shape_cast %51 : vector<1x4x256xf32> to vector<4x256xf32>
    %c8 = arith.constant 8 : index
    %c0_49 = arith.constant 0 : index
    %c0_50 = arith.constant 0 : index
    %53 = vector.load %arg2[%c8, %c0_49, %c0_50] : memref<9x8x4xf32, #tpu.memory_space<vmem>>, vector<1x8x4xf32>
    %54 = vector.shape_cast %53 : vector<1x8x4xf32> to vector<8x4xf32>
    %cst_51 = arith.constant dense<0.000000e+00> : vector<8x256xf32>
    %55 = tpu.matmul %54, %52, %cst_51 {dimension_numbers = #tpu.dot_dimension_numbers<[1], [0], [0], [1], [0, 0, 1, 1], [], []>} : vector<8x4xf32>, vector<4x256xf32>, vector<8x256xf32> -> vector<8x256xf32>
    %56 = arith.addf %50, %55 : vector<8x256xf32>
    %57 = vector.broadcast %0 : vector<8x1xf32> to vector<8x256xf32>
    %58 = arith.mulf %56, %57 : vector<8x256xf32>
    %59 = vector.broadcast %1 : vector<8x1xf32> to vector<8x256xf32>
    %60 = arith.addf %58, %59 : vector<8x256xf32>
    %61 = arith.negf %60 : vector<8x256xf32>
    %62 = math.exp %61 : vector<8x256xf32>
    %cst_52 = arith.constant 1.000000e+00 : f32
    %63 = vector.broadcast %cst_52 : f32 to vector<8x256xf32>
    %64 = arith.addf %63, %62 : vector<8x256xf32>
    %65 = arith.divf %63, %64 : vector<8x256xf32>
    %66 = arith.mulf %60, %65 : vector<8x256xf32>
    %c0_53 = arith.constant 0 : index
    %c0_54 = arith.constant 0 : index
    %c0_55 = arith.constant 0 : index
    %67 = vector.load %arg5[%c0_53, %c0_54, %c0_55] : memref<1x8x256xf32, #tpu.memory_space<vmem>>, vector<1x8x256xf32>
    %68 = vector.shape_cast %67 : vector<1x8x256xf32> to vector<8x256xf32>
    %69 = vector.shape_cast %66 : vector<8x256xf32> to vector<1x8x256xf32>
    tpu.vector_store %arg5[%c0_53, %c0_54, %c0_55], %69 {strides = array<i32>} : memref<1x8x256xf32, #tpu.memory_space<vmem>>, vector<1x8x256xf32>,
    return
  }
  func.func @transform_0(%arg0: i32) -> (i32, i32, i32) {
    %c0_i32 = arith.constant 0 : i32
    %c0_i32_0 = arith.constant 0 : i32
    %c0_i32_1 = arith.constant 0 : i32
    return %arg0, %c0_i32, %c0_i32_0 : i32, i32, i32
  }
  func.func @transform_1(%arg0: i32) -> (i32, i32, i32) {
    %c0_i32 = arith.constant 0 : i32
    %c0_i32_0 = arith.constant 0 : i32
    %c0_i32_1 = arith.constant 0 : i32
    %c0_i32_2 = arith.constant 0 : i32
    return %c0_i32, %c0_i32_0, %c0_i32_1 : i32, i32, i32
  }
  func.func @transform_2(%arg0: i32) -> (i32, i32) {
    %c0_i32 = arith.constant 0 : i32
    %c0_i32_0 = arith.constant 0 : i32
    %c0_i32_1 = arith.constant 0 : i32
    return %c0_i32, %c0_i32_0 : i32, i32
  }
  func.func @transform_3(%arg0: i32) -> (i32, i32) {
    %c0_i32 = arith.constant 0 : i32
    %c0_i32_0 = arith.constant 0 : i32
    %c0_i32_1 = arith.constant 0 : i32
    return %c0_i32, %c0_i32_0 : i32, i32
  }
  func.func @transform_4(%arg0: i32) -> (i32, i32, i32) {
    %c0_i32 = arith.constant 0 : i32
    %c0_i32_0 = arith.constant 0 : i32
    %c0_i32_1 = arith.constant 0 : i32
    return %arg0, %c0_i32, %c0_i32_0 : i32, i32, i32
  }
}

</mosaic_0001>

<llo_original>
// kernel: tpu_custom_call.1
$region0: #{tpu_custom_call.1}
  #allocation0 [shape = 'u32[]', space=smem, size = 0x4, offset = 0x4, fixed_abs, tag = 'smem constant byte address 0x4 - core index']
  #allocation1 [shape = 'u32[144,128]{1,0:T(1,128)}', space=vmem, size = 0x12000, scoped, tag = 'internal scratch']
  %s0 = inlined_call_operand.vmem [shape: f32[2,4,384], index: 0, kind: input, shape index: {}]
  %s1 = inlined_call_operand.vmem [shape: f32[9,8,4], index: 1, kind: input, shape index: {}]
  %s2 = inlined_call_operand.vmem [shape: f32[8,1], index: 2, kind: input, shape index: {}]
  %s3 = inlined_call_operand.vmem [shape: f32[8,1], index: 3, kind: input, shape index: {}]
  %s4 = inlined_call_operand.hbm [shape: f32[2,8,256], index: 4, kind: output, shape index: {}]
  %s5 = sld [smem:[#allocation0]]
  $region49: #{tpu_custom_call.1} parent=0
    _
  %s7 = ssub.s32 1, %s5
  %s8 = scalar_select 0, %s7, %s5
  $region1: #{tpu_custom_call.1} parent=0
    #allocation2 [shape = 'u8[16384]{0}', space=vmem, size = 0x4000, scoped, tag = 'output window, operand 0']
    #allocation3 [shape = 's32[2]{0}', space=sflag, size = 0x8, scoped, tag = 'scoped memory for tpu_custom_call.1']
    %9 = vsyncpa [#allocation3], 0
    %s10 = scalar_lea.sflag [#allocation3], 1
    %11 = vsyncpa %s10, 0
    loop: start=0, step=1, limit=4
    $region2: #{tpu_custom_call.1} parent=1 // loop_pre_header
      _
    $region3: #{tpu_custom_call.1} parent=1 // loop_header
      %s13 = sphi 0, %s17
      %p14 = scmp.ge.s32.totalorder %s13, 4
      %s23 = sphi 0, %s25
      %s26 = sphi 0, %s23
      %s27 = sphi 0, %s26
      %s43 = sphi 0, %s27
      %s47 = sphi 0, %s47
      %s49 = sphi 0, %s47
      %s50 = sphi 0, %s49
      %s64 = sphi 0, %s50
      %s68 = sphi 0, %s68
      %s70 = sphi 0, %s68
      %s71 = sphi 0, %s70
      %s85 = sphi 0, %s71
      %s89 = sphi 0, %s89
      %s91 = sphi 0, %s89
      %s92 = sphi 0, %s91
      %s106 = sphi 0, %s92
      %s112 = sphi 0, %s114
      %s115 = sphi 0, %s112
      %s116 = sphi 0, %s115
      %s132 = sphi 0, %s116
    $region4: #{tpu_custom_call.1} parent=1 // loop_header_branch
      %16 = sbr.rel (%p14) target = $region8
    $region5: #{tpu_custom_call.1} parent=1 // loop_body
      %s18 = ssub.s32 %s13, 1
      %s19 = ssub.s32 %s13, 2
      %s20 = sadd.s32 %s13, 1
      %s21 = ssub.s32 %s13, %s20
      %p22 = scmp.eq.s32.totalorder %s21, 0
      %s24 = sadd.s32 %s23, 1
      %s25 = scalar_select %p22, %s23, %s24
      %p28 = pneg %p22
      %p29 = scmp.eq.s32.totalorder %s13, 1
      %p30 = por %p28, %p29
      %p31 = scmp.ne.s32.totalorder %s23, %s26
      %p32 = scmp.eq.s32.totalorder %s13, 0
      %p33 = por %p31, %p32
      %p34 = scmp.ne.s32.totalorder %s23, %s26
      %p35 = scmp.eq.s32.totalorder %s18, 1
      %p36 = por %p34, %p35
      %p37 = scmp.ne.s32.totalorder %s26, %s27
      %p38 = scmp.eq.s32.totalorder %s18, 0
      %p39 = por %p37, %p38
      %p40 = scmp.ne.s32.totalorder %s26, %s27
      %p41 = scmp.eq.s32.totalorder %s19, 1
      %p42 = por %p40, %p41
      %p44 = scmp.ne.s32.totalorder %s27, %s43
      %p45 = scmp.eq.s32.totalorder %s19, 0
      %p46 = por %p44, %p45
      %s48 = sadd.s32 %s47, 1
      %p51 = scmp.eq.s32.totalorder %s13, 1
      %p52 = scmp.ne.s32.totalorder %s47, %s49
      %p53 = scmp.eq.s32.totalorder %s13, 0
      %p54 = por %p52, %p53
      %p55 = scmp.ne.s32.totalorder %s47, %s49
      %p56 = scmp.eq.s32.totalorder %s18, 1
      %p57 = por %p55, %p56
      %p58 = scmp.ne.s32.totalorder %s49, %s50
      %p59 = scmp.eq.s32.totalorder %s18, 0
      %p60 = por %p58, %p59
      %p61 = scmp.ne.s32.totalorder %s49, %s50
      %p62 = scmp.eq.s32.totalorder %s19, 1
      %p63 = por %p61, %p62
      %p65 = scmp.ne.s32.totalorder %s50, %s64
      %p66 = scmp.eq.s32.totalorder %s19, 0
      %p67 = por %p65, %p66
      %s69 = sadd.s32 %s68, 1
      %p72 = scmp.eq.s32.totalorder %s13, 1
      %p73 = scmp.ne.s32.totalorder %s68, %s70
      %p74 = scmp.eq.s32.totalorder %s13, 0
      %p75 = por %p73, %p74
      %p76 = scmp.ne.s32.totalorder %s68, %s70
      %p77 = scmp.eq.s32.totalorder %s18, 1
      %p78 = por %p76, %p77
      %p79 = scmp.ne.s32.totalorder %s70, %s71
      %p80 = scmp.eq.s32.totalorder %s18, 0
      %p81 = por %p79, %p80
      %p82 = scmp.ne.s32.totalorder %s70, %s71
      %p83 = scmp.eq.s32.totalorder %s19, 1
      %p84 = por %p82, %p83
      %p86 = scmp.ne.s32.totalorder %s71, %s85
      %p87 = scmp.eq.s32.totalorder %s19, 0
      %p88 = por %p86, %p87
      %s90 = sadd.s32 %s89, 1
      %p93 = scmp.eq.s32.totalorder %s13, 1
      %p94 = scmp.ne.s32.totalorder %s89, %s91
      %p95 = scmp.eq.s32.totalorder %s13, 0
      %p96 = por %p94, %p95
      %p97 = scmp.ne.s32.totalorder %s89, %s91
      %p98 = scmp.eq.s32.totalorder %s18, 1
      %p99 = por %p97, %p98
      %p100 = scmp.ne.s32.totalorder %s91, %s92
      %p101 = scmp.eq.s32.totalorder %s18, 0
      %p102 = por %p100, %p101
      %p103 = scmp.ne.s32.totalorder %s91, %s92
      %p104 = scmp.eq.s32.totalorder %s19, 1
      %p105 = por %p103, %p104
      %p107 = scmp.ne.s32.totalorder %s92, %s106
      %p108 = scmp.eq.s32.totalorder %s19, 0
      %p109 = por %p107, %p108
      %s110 = ssub.s32 %s13, %s20
      %p111 = scmp.eq.s32.totalorder %s110, 0
      %s113 = sadd.s32 %s112, 1
      %s114 = scalar_select %p111, %s112, %s113
      %p117 = pneg %p111
      %p118 = scmp.eq.s32.totalorder %s13, 1
      %p119 = por %p117, %p118
      %p120 = scmp.ne.s32.totalorder %s112, %s115
      %p121 = scmp.eq.s32.totalorder %s13, 0
      %p122 = por %p120, %p121
      %p123 = scmp.ne.s32.totalorder %s112, %s115
      %p124 = scmp.eq.s32.totalorder %s18, 1
      %p125 = por %p123, %p124
      %p126 = scmp.ne.s32.totalorder %s115, %s116
      %p127 = scmp.eq.s32.totalorder %s18, 0
      %p128 = por %p126, %p127
      %p129 = scmp.ne.s32.totalorder %s115, %s116
      %p130 = scmp.eq.s32.totalorder %s19, 1
      %p131 = por %p129, %p130
      %p133 = scmp.ne.s32.totalorder %s116, %s132
      %p134 = scmp.eq.s32.totalorder %s19, 0
      %p135 = por %p133, %p134
      %p136 = scmp.le.s32.totalorder 1, %s13
      %p137 = scmp.lt.s32.totalorder %s13, 3
      %p138 = pnand %p136, %p137
      %p139 = pneg %p138
      // Predicated region
      $region9: #{tpu_custom_call.1} parent=5 // pred_check
        _
      $region10: #{tpu_custom_call.1} parent=5 // pred_check_branch
        %141 = sbr.rel (%p138) target = $region12
      $region11: #{tpu_custom_call.1} parent=5 // pred_region
        %s142 = ssub.s32 %s13, 1
        // Predicated region
        $region13: #{tpu_custom_call.1} parent=11 // pred_check
          %p143 = pneg %p60
        $region14: #{tpu_custom_call.1} parent=11 // pred_check_branch
          %145 = sbr.rel (%p143) target = $region16
        $region15: #{tpu_custom_call.1} parent=11 // pred_region
          _
        $region16: #{tpu_custom_call.1} parent=11 // pred_fallthru
          _
        // Predicated region
        $region17: #{tpu_custom_call.1} parent=11 // pred_check
          %p146 = pneg %p81
        $region18: #{tpu_custom_call.1} parent=11 // pred_check_branch
          %148 = sbr.rel (%p146) target = $region20
        $region19: #{tpu_custom_call.1} parent=11 // pred_region
          _
        $region20: #{tpu_custom_call.1} parent=11 // pred_fallthru
          _
        // Predicated region
        $region21: #{tpu_custom_call.1} parent=11 // pred_check
          %p149 = pneg %p102
        $region22: #{tpu_custom_call.1} parent=11 // pred_check_branch
          %151 = sbr.rel (%p149) target = $region24
        $region23: #{tpu_custom_call.1} parent=11 // pred_region
          _
        $region24: #{tpu_custom_call.1} parent=11 // pred_fallthru
          _
      $region12: #{tpu_custom_call.1} parent=5 // pred_fallthru
        _
      %p152 = scmp.lt.s32.totalorder %s13, 2
      // Predicated region
      $region25: #{tpu_custom_call.1} parent=5 // pred_check
        %p153 = pneg %p152
      $region26: #{tpu_custom_call.1} parent=5 // pred_check_branch
        %155 = sbr.rel (%p153) target = $region28
      $region27: #{tpu_custom_call.1} parent=5 // pred_region
        // Predicated region
        $region29: #{tpu_custom_call.1} parent=27 // pred_check
          %p156 = pneg %p33
        $region30: #{tpu_custom_call.1} parent=27 // pred_check_branch
          %158 = sbr.rel (%p156) target = $region32
        $region31: #{tpu_custom_call.1} parent=27 // pred_region
          %p159 = scmp.lt.s32.totalorder %s13, 1
          %s160 = scalar_select %p159, %s13, 1
          %s161 = smul.addr %s160, 3
          %s162 = smul.addr %s161, 4
          %s163 = scalar_lea.vmem %s0, %s162
        $region32: #{tpu_custom_call.1} parent=27 // pred_fallthru
          _
      $region28: #{tpu_custom_call.1} parent=5 // pred_fallthru
        _
      %p164 = scmp.le.s32.totalorder 1, %s13
      %p165 = scmp.lt.s32.totalorder %s13, 3
      %p166 = pnand %p164, %p165
      %p167 = pneg %p166
      // Predicated region
      $region33: #{tpu_custom_call.1} parent=5 // pred_check
        _
      $region34: #{tpu_custom_call.1} parent=5 // pred_check_branch
        %169 = sbr.rel (%p166) target = $region36
      $region35: #{tpu_custom_call.1} parent=5 // pred_region
        %s170 = ssub.s32 %s13, 1
        %p171 = scmp.lt.s32.totalorder %s18, 1
        %s172 = scalar_select %p171, %s18, 1
        %s173 = smul.addr %s172, 3
        %s174 = smul.addr %s173, 4
        %s175 = scalar_lea.vmem %s0, %s174
        %p176 = pneg %p39
        %p177 = pneg %p36
        %p178 = pneg %p60
        %p179 = pneg %p57
        %p180 = pneg %p81
        %p181 = pneg %p78
        %p182 = pneg %p102
        %p183 = pneg %p99
        %p184 = pneg %p128
        %p185 = pneg %p125
        %s186 = sand.u32 %s115, 1
        %s187 = scalar_lea.sflag [#allocation3], %s186
        %s188 = sand.u32 %s115, 1
        %s189 = smul.addr %s188, 16
        %s190 = scalar_lea.vmem [#allocation2], %s189
        %p191 = scmp.lt.s32.totalorder %s18, 1
        %s192 = scalar_select %p191, %s18, 1
        %s193 = smul.addr %s192, 3
        %s194 = smul.addr %s193, 4
        %s195 = scalar_lea.vmem %s0, %s194
        %v196 = vld [vmem:[%s2] sm:$0xff]
        %v197 = vld [vmem:[%s3] sm:$0xff]
        %v198 = vld [vmem:[%s195] sm:$0xff]
        %v199 = vld [vmem:[%s1] sm:$0xff]
        %v200 = vld [vmem:[%s195] sm:$0xff]
        %v201 = vld [vmem:[%s195 + $0x8] sm:$0xf]
        %s202 = scalar_lea.vmem %s1, 8
        %v203 = vld [vmem:[%s202] sm:$0xff]
        %v206 = vcombine.high %v200, %v200
        %207 = vrot.lane.b32.xlu0 %v200, 127
        %v208 = vpop.permute.xlu0 %207
        %209 = vrot.lane.b32.xlu0 %v206, 127
        %v210 = vpop.permute.xlu0 %209
        %211 = vrot.lane.b32.xlu0 %v201, 127
        %v212 = vpop.permute.xlu0 %211
        %vm213 = vcmask 1039360
        %v214 = vsel %vm213, %v208, %v210
        %v215 = vsel %vm213, %v210, %v212
        %vm216 = vcmask 31744
        %v218 = vsel %vm216, %v203, 0
        %vm220 = vcmask 1043456
        %v221 = vsel %vm220, %v214, 0
        %v223 = vsel %vm220, %v215, 0
        %225 = vmatprep.subr.mxu0 %v223
        %226 = vmatpush1.msra.mxu0 %v221
        %227 = vmatprep.subr.mxu0 0.0
        %228 = vmatpush1.msra.mxu0 0.0
        %229 = vmatprep.subr.mxu0 0.0
        %230 = vmatpush1.msra.mxu0 0.0
        %231 = vmatprep.subr.mxu0 0.0
        %232 = vmatpush1.msra.mxu0 0.0
        %233 = vmatprep.subr.mxu0 0.0
        %234 = vmatpush1.msra.mxu0 0.0
        %235 = vmatprep.subr.mxu0 0.0
        %236 = vmatpush1.msra.mxu0 0.0
        %237 = vmatprep.subr.mxu0 0.0
        %238 = vmatpush1.msra.mxu0 0.0
        %239 = vmatprep.subr.mxu0 0.0
        %240 = vmatpush1.msra.mxu0 0.0
        %241 = vmatprep.subr.mxu0 0.0
        %242 = vmatpush1.msra.mxu0 0.0
        %243 = vmatprep.subr.mxu0 0.0
        %244 = vmatpush1.msra.mxu0 0.0
        %245 = vmatprep.subr.mxu0 0.0
        %246 = vmatpush1.msra.mxu0 0.0
        %247 = vmatprep.subr.mxu0 0.0
        %248 = vmatpush1.msra.mxu0 0.0
        %249 = vmatprep.subr.mxu0 0.0
        %250 = vmatpush1.msra.mxu0 0.0
        %251 = vmatprep.subr.mxu0 0.0
        %252 = vmatpush1.msra.mxu0 0.0
        %253 = vmatprep.subr.mxu0 0.0
        %254 = vmatpush1.msra.mxu0 0.0
        %255 = vmatprep.subr.mxu0 0.0
        %256 = vmatpush1.msra.mxu0 0.0
        %257 = vmatprep.subr.mxu0 0.0
        %258 = vmatpush1.msra.mxu0 0.0
        %259 = vmatprep.subr.mxu0 0.0
        %260 = vmatpush1.msra.mxu0 0.0
        %261 = vmatprep.subr.mxu0 0.0
        %262 = vmatpush1.msra.mxu0 0.0
        %263 = vmatprep.subr.mxu0 0.0
        %264 = vmatpush1.msra.mxu0 0.0
        %265 = vmatprep.subr.mxu0 0.0
        %266 = vmatpush1.msra.mxu0 0.0
        %267 = vmatprep.subr.mxu0 0.0
        %268 = vmatpush1.msra.mxu0 0.0
        %269 = vmatprep.subr.mxu0 0.0
        %270 = vmatpush1.msra.mxu0 0.0
        %271 = vmatprep.subr.mxu0 0.0
        %272 = vmatpush1.msra.mxu0 0.0
        %273 = vmatprep.subr.mxu0 0.0
        %274 = vmatpush1.msra.mxu0 0.0
        %275 = vmatprep.subr.mxu0 0.0
        %276 = vmatpush1.msra.mxu0 0.0
        %277 = vmatprep.subr.mxu0 0.0
        %278 = vmatpush1.msra.mxu0 0.0
        %279 = vmatprep.subr.mxu0 0.0
        %280 = vmatpush1.msra.mxu0 0.0
        %281 = vmatprep.subr.mxu0 0.0
        %282 = vmatpush1.msra.mxu0 0.0
        %283 = vmatprep.subr.mxu0 0.0
        %284 = vmatpush1.msra.mxu0 0.0
        %285 = vmatprep.subr.mxu0 0.0
        %286 = vmatpush1.msra.mxu0 0.0
        %287 = vmatprep.subr.mxu0 0.0
        %288 = vmatpush1.msra.mxu0 0.0
        %289 = vmatprep.mubr.f32.mxu0 0.0
        %290 = vmatmul.mubr.f32.gmra.mrb[0].mxu0 %v218
        %v291 = vpop.f32.mrb[0].mxu0
        %v292 = vadd.f32 0.0, %v291
        %v293 = vpop.f32.mrb[0].mxu0
        %v294 = vadd.f32 0.0, %v293
        %295 = vdwg.mxu0
        %v297 = vcombine.high %v198, %v198
        %v299 = vsel %vm216, %v199, 0
        %v301 = vsel %vm220, %v198, 0
        %v303 = vsel %vm220, %v297, 0
        %305 = vmatprep.subr.mxu0 %v303
        %306 = vmatpush1.msra.mxu0 %v301
        %307 = vmatprep.subr.mxu0 0.0
        %308 = vmatpush1.msra.mxu0 0.0
        %309 = vmatprep.subr.mxu0 0.0
        %310 = vmatpush1.msra.mxu0 0.0
        %311 = vmatprep.subr.mxu0 0.0
        %312 = vmatpush1.msra.mxu0 0.0
        %313 = vmatprep.subr.mxu0 0.0
        %314 = vmatpush1.msra.mxu0 0.0
        %315 = vmatprep.subr.mxu0 0.0
        %316 = vmatpush1.msra.mxu0 0.0
        %317 = vmatprep.subr.mxu0 0.0
        %318 = vmatpush1.msra.mxu0 0.0
        %319 = vmatprep.subr.mxu0 0.0
        %320 = vmatpush1.msra.mxu0 0.0
        %321 = vmatprep.subr.mxu0 0.0
        %322 = vmatpush1.msra.mxu0 0.0
        %323 = vmatprep.subr.mxu0 0.0
        %324 = vmatpush1.msra.mxu0 0.0
        %325 = vmatprep.subr.mxu0 0.0
        %326 = vmatpush1.msra.mxu0 0.0
        %327 = vmatprep.subr.mxu0 0.0
        %328 = vmatpush1.msra.mxu0 0.0
        %329 = vmatprep.subr.mxu0 0.0
        %330 = vmatpush1.msra.mxu0 0.0
        %331 = vmatprep.subr.mxu0 0.0
        %332 = vmatpush1.msra.mxu0 0.0
        %333 = vmatprep.subr.mxu0 0.0
        %334 = vmatpush1.msra.mxu0 0.0
        %335 = vmatprep.subr.mxu0 0.0
        %336 = vmatpush1.msra.mxu0 0.0
        %337 = vmatprep.subr.mxu0 0.0
        %338 = vmatpush1.msra.mxu0 0.0
        %339 = vmatprep.subr.mxu0 0.0
        %340 = vmatpush1.msra.mxu0 0.0
        %341 = vmatprep.subr.mxu0 0.0
        %342 = vmatpush1.msra.mxu0 0.0
        %343 = vmatprep.subr.mxu0 0.0
        %344 = vmatpush1.msra.mxu0 0.0
        %345 = vmatprep.subr.mxu0 0.0
        %346 = vmatpush1.msra.mxu0 0.0
        %347 = vmatprep.subr.mxu0 0.0
        %348 = vmatpush1.msra.mxu0 0.0
        %349 = vmatprep.subr.mxu0 0.0
        %350 = vmatpush1.msra.mxu0 0.0
        %351 = vmatprep.subr.mxu0 0.0
        %352 = vmatpush1.msra.mxu0 0.0
        %353 = vmatprep.subr.mxu0 0.0
        %354 = vmatpush1.msra.mxu0 0.0
        %355 = vmatprep.subr.mxu0 0.0
        %356 = vmatpush1.msra.mxu0 0.0
        %357 = vmatprep.subr.mxu0 0.0
        %358 = vmatpush1.msra.mxu0 0.0
        %359 = vmatprep.subr.mxu0 0.0
        %360 = vmatpush1.msra.mxu0 0.0
        %361 = vmatprep.subr.mxu0 0.0
        %362 = vmatpush1.msra.mxu0 0.0
        %363 = vmatprep.subr.mxu0 0.0
        %364 = vmatpush1.msra.mxu0 0.0
        %365 = vmatprep.subr.mxu0 0.0
        %366 = vmatpush1.msra.mxu0 0.0
        %367 = vmatprep.subr.mxu0 0.0
        %368 = vmatpush1.msra.mxu0 0.0
        %369 = vmatprep.mubr.f32.mxu0 0.0
        %370 = vmatmul.mubr.f32.gmra.mrb[0].mxu0 %v299
        %v371 = vpop.f32.mrb[0].mxu0
        %v372 = vadd.f32 %v292, %v371
        %v373 = vpop.f32.mrb[0].mxu0
        %v374 = vadd.f32 %v294, %v373
        %375 = vdwg.mxu0
        %v376 = vld [vmem:[%s195] sm:$0xff]
        %v377 = vld [vmem:[%s195 + $0x8] sm:$0xf]
        %s378 = scalar_lea.vmem %s1, 16
        %v379 = vld [vmem:[%s378] sm:$0xff]
        %v382 = vcombine.high %v376, %v376
        %383 = vrot.lane.b32.xlu0 %v376, 126
        %v384 = vpop.permute.xlu0 %383
        %385 = vrot.lane.b32.xlu0 %v382, 126
        %v386 = vpop.permute.xlu0 %385
        %387 = vrot.lane.b32.xlu0 %v377, 126
        %v388 = vpop.permute.xlu0 %387
        %vm389 = vcmask 1031168
        %v390 = vsel %vm389, %v384, %v386
        %v391 = vsel %vm389, %v386, %v388
        %v393 = vsel %vm216, %v379, 0
        %v395 = vsel %vm220, %v390, 0
        %v397 = vsel %vm220, %v391, 0
        %399 = vmatprep.subr.mxu0 %v397
        %400 = vmatpush1.msra.mxu0 %v395
        %401 = vmatprep.subr.mxu0 0.0
        %402 = vmatpush1.msra.mxu0 0.0
        %403 = vmatprep.subr.mxu0 0.0
        %404 = vmatpush1.msra.mxu0 0.0
        %405 = vmatprep.subr.mxu0 0.0
        %406 = vmatpush1.msra.mxu0 0.0
        %407 = vmatprep.subr.mxu0 0.0
        %408 = vmatpush1.msra.mxu0 0.0
        %409 = vmatprep.subr.mxu0 0.0
        %410 = vmatpush1.msra.mxu0 0.0
        %411 = vmatprep.subr.mxu0 0.0
        %412 = vmatpush1.msra.mxu0 0.0
        %413 = vmatprep.subr.mxu0 0.0
        %414 = vmatpush1.msra.mxu0 0.0
        %415 = vmatprep.subr.mxu0 0.0
        %416 = vmatpush1.msra.mxu0 0.0
        %417 = vmatprep.subr.mxu0 0.0
        %418 = vmatpush1.msra.mxu0 0.0
        %419 = vmatprep.subr.mxu0 0.0
        %420 = vmatpush1.msra.mxu0 0.0
        %421 = vmatprep.subr.mxu0 0.0
        %422 = vmatpush1.msra.mxu0 0.0
        %423 = vmatprep.subr.mxu0 0.0
        %424 = vmatpush1.msra.mxu0 0.0
        %425 = vmatprep.subr.mxu0 0.0
        %426 = vmatpush1.msra.mxu0 0.0
        %427 = vmatprep.subr.mxu0 0.0
        %428 = vmatpush1.msra.mxu0 0.0
        %429 = vmatprep.subr.mxu0 0.0
        %430 = vmatpush1.msra.mxu0 0.0
        %431 = vmatprep.subr.mxu0 0.0
        %432 = vmatpush1.msra.mxu0 0.0
        %433 = vmatprep.subr.mxu0 0.0
        %434 = vmatpush1.msra.mxu0 0.0
        %435 = vmatprep.subr.mxu0 0.0
        %436 = vmatpush1.msra.mxu0 0.0
        %437 = vmatprep.subr.mxu0 0.0
        %438 = vmatpush1.msra.mxu0 0.0
        %439 = vmatprep.subr.mxu0 0.0
        %440 = vmatpush1.msra.mxu0 0.0
        %441 = vmatprep.subr.mxu0 0.0
        %442 = vmatpush1.msra.mxu0 0.0
        %443 = vmatprep.subr.mxu0 0.0
        %444 = vmatpush1.msra.mxu0 0.0
        %445 = vmatprep.subr.mxu0 0.0
        %446 = vmatpush1.msra.mxu0 0.0
        %447 = vmatprep.subr.mxu0 0.0
        %448 = vmatpush1.msra.mxu0 0.0
        %449 = vmatprep.subr.mxu0 0.0
        %450 = vmatpush1.msra.mxu0 0.0
        %451 = vmatprep.subr.mxu0 0.0
        %452 = vmatpush1.msra.mxu0 0.0
        %453 = vmatprep.subr.mxu0 0.0
        %454 = vmatpush1.msra.mxu0 0.0
        %455 = vmatprep.subr.mxu0 0.0
        %456 = vmatpush1.msra.mxu0 0.0
        %457 = vmatprep.subr.mxu0 0.0
        %458 = vmatpush1.msra.mxu0 0.0
        %459 = vmatprep.subr.mxu0 0.0
        %460 = vmatpush1.msra.mxu0 0.0
        %461 = vmatprep.subr.mxu0 0.0
        %462 = vmatpush1.msra.mxu0 0.0
        %463 = vmatprep.mubr.f32.mxu0 0.0
        %464 = vmatmul.mubr.f32.gmra.mrb[0].mxu0 %v393
        %v465 = vpop.f32.mrb[0].mxu0
        %v466 = vadd.f32 0.0, %v465
        %v467 = vpop.f32.mrb[0].mxu0
        %v468 = vadd.f32 0.0, %v467
        %469 = vdwg.mxu0
        %v470 = vadd.f32 %v372, %v466
        %v471 = vadd.f32 %v374, %v468
        %v472 = vld [vmem:[%s195] sm:$0xff]
        %v473 = vld [vmem:[%s195 + $0x8] sm:$0xf]
        %s474 = scalar_lea.vmem %s1, 24
        %v475 = vld [vmem:[%s474] sm:$0xff]
        %v478 = vcombine.high %v472, %v472
        %479 = vrot.lane.b32.xlu0 %v472, 112
        %v480 = vpop.permute.xlu0 %479
        %481 = vrot.lane.b32.xlu0 %v478, 112
        %v482 = vpop.permute.xlu0 %481
        %483 = vrot.lane.b32.xlu0 %v473, 112
        %v484 = vpop.permute.xlu0 %483
        %vm485 = vcmask 916480
        %v486 = vsel %vm485, %v480, %v482
        %v487 = vsel %vm485, %v482, %v484
        %v489 = vsel %vm216, %v475, 0
        %v491 = vsel %vm220, %v486, 0
        %v493 = vsel %vm220, %v487, 0
        %495 = vmatprep.subr.mxu0 %v493
        %496 = vmatpush1.msra.mxu0 %v491
        %497 = vmatprep.subr.mxu0 0.0
        %498 = vmatpush1.msra.mxu0 0.0
        %499 = vmatprep.subr.mxu0 0.0
        %500 = vmatpush1.msra.mxu0 0.0
        %501 = vmatprep.subr.mxu0 0.0
        %502 = vmatpush1.msra.mxu0 0.0
        %503 = vmatprep.subr.mxu0 0.0
        %504 = vmatpush1.msra.mxu0 0.0
        %505 = vmatprep.subr.mxu0 0.0
        %506 = vmatpush1.msra.mxu0 0.0
        %507 = vmatprep.subr.mxu0 0.0
        %508 = vmatpush1.msra.mxu0 0.0
        %509 = vmatprep.subr.mxu0 0.0
        %510 = vmatpush1.msra.mxu0 0.0
        %511 = vmatprep.subr.mxu0 0.0
        %512 = vmatpush1.msra.mxu0 0.0
        %513 = vmatprep.subr.mxu0 0.0
        %514 = vmatpush1.msra.mxu0 0.0
        %515 = vmatprep.subr.mxu0 0.0
        %516 = vmatpush1.msra.mxu0 0.0
        %517 = vmatprep.subr.mxu0 0.0
        %518 = vmatpush1.msra.mxu0 0.0
        %519 = vmatprep.subr.mxu0 0.0
        %520 = vmatpush1.msra.mxu0 0.0
        %521 = vmatprep.subr.mxu0 0.0
        %522 = vmatpush1.msra.mxu0 0.0
        %523 = vmatprep.subr.mxu0 0.0
        %524 = vmatpush1.msra.mxu0 0.0
        %525 = vmatprep.subr.mxu0 0.0
        %526 = vmatpush1.msra.mxu0 0.0
        %527 = vmatprep.subr.mxu0 0.0
        %528 = vmatpush1.msra.mxu0 0.0
        %529 = vmatprep.subr.mxu0 0.0
        %530 = vmatpush1.msra.mxu0 0.0
        %531 = vmatprep.subr.mxu0 0.0
        %532 = vmatpush1.msra.mxu0 0.0
        %533 = vmatprep.subr.mxu0 0.0
        %534 = vmatpush1.msra.mxu0 0.0
        %535 = vmatprep.subr.mxu0 0.0
        %536 = vmatpush1.msra.mxu0 0.0
        %537 = vmatprep.subr.mxu0 0.0
        %538 = vmatpush1.msra.mxu0 0.0
        %539 = vmatprep.subr.mxu0 0.0
        %540 = vmatpush1.msra.mxu0 0.0
        %541 = vmatprep.subr.mxu0 0.0
        %542 = vmatpush1.msra.mxu0 0.0
        %543 = vmatprep.subr.mxu0 0.0
        %544 = vmatpush1.msra.mxu0 0.0
        %545 = vmatprep.subr.mxu0 0.0
        %546 = vmatpush1.msra.mxu0 0.0
        %547 = vmatprep.subr.mxu0 0.0
        %548 = vmatpush1.msra.mxu0 0.0
        %549 = vmatprep.subr.mxu0 0.0
        %550 = vmatpush1.msra.mxu0 0.0
        %551 = vmatprep.subr.mxu0 0.0
        %552 = vmatpush1.msra.mxu0 0.0
        %553 = vmatprep.subr.mxu0 0.0
        %554 = vmatpush1.msra.mxu0 0.0
        %555 = vmatprep.subr.mxu0 0.0
        %556 = vmatpush1.msra.mxu0 0.0
        %557 = vmatprep.subr.mxu0 0.0
        %558 = vmatpush1.msra.mxu0 0.0
        %559 = vmatprep.mubr.f32.mxu0 0.0
        %560 = vmatmul.mubr.f32.gmra.mrb[0].mxu0 %v489
        %v561 = vpop.f32.mrb[0].mxu0
        %v562 = vadd.f32 0.0, %v561
        %v563 = vpop.f32.mrb[0].mxu0
        %v564 = vadd.f32 0.0, %v563
        %565 = vdwg.mxu0
        %v566 = vadd.f32 %v470, %v562
        %v567 = vadd.f32 %v471, %v564
        %v568 = vld [vmem:[%s195] sm:$0xff]
        %v569 = vld [vmem:[%s195 + $0x8] sm:$0xf]
        %s570 = scalar_lea.vmem %s1, 32
        %v571 = vld [vmem:[%s570] sm:$0xff]
        %v574 = vcombine.high %v568, %v568
        %575 = vrot.lane.b32.xlu0 %v568, 111
        %v576 = vpop.permute.xlu0 %575
        %577 = vrot.lane.b32.xlu0 %v574, 111
        %v578 = vpop.permute.xlu0 %577
        %579 = vrot.lane.b32.xlu0 %v569, 111
        %v580 = vpop.permute.xlu0 %579
        %vm581 = vcmask 908288
        %v582 = vsel %vm581, %v576, %v578
        %v583 = vsel %vm581, %v578, %v580
        %v585 = vsel %vm216, %v571, 0
        %v587 = vsel %vm220, %v582, 0
        %v589 = vsel %vm220, %v583, 0
        %591 = vmatprep.subr.mxu0 %v589
        %592 = vmatpush1.msra.mxu0 %v587
        %593 = vmatprep.subr.mxu0 0.0
        %594 = vmatpush1.msra.mxu0 0.0
        %595 = vmatprep.subr.mxu0 0.0
        %596 = vmatpush1.msra.mxu0 0.0
        %597 = vmatprep.subr.mxu0 0.0
        %598 = vmatpush1.msra.mxu0 0.0
        %599 = vmatprep.subr.mxu0 0.0
        %600 = vmatpush1.msra.mxu0 0.0
        %601 = vmatprep.subr.mxu0 0.0
        %602 = vmatpush1.msra.mxu0 0.0
        %603 = vmatprep.subr.mxu0 0.0
        %604 = vmatpush1.msra.mxu0 0.0
        %605 = vmatprep.subr.mxu0 0.0
        %606 = vmatpush1.msra.mxu0 0.0
        %607 = vmatprep.subr.mxu0 0.0
        %608 = vmatpush1.msra.mxu0 0.0
        %609 = vmatprep.subr.mxu0 0.0
        %610 = vmatpush1.msra.mxu0 0.0
        %611 = vmatprep.subr.mxu0 0.0
        %612 = vmatpush1.msra.mxu0 0.0
        %613 = vmatprep.subr.mxu0 0.0
        %614 = vmatpush1.msra.mxu0 0.0
        %615 = vmatprep.subr.mxu0 0.0
        %616 = vmatpush1.msra.mxu0 0.0
        %617 = vmatprep.subr.mxu0 0.0
        %618 = vmatpush1.msra.mxu0 0.0
        %619 = vmatprep.subr.mxu0 0.0
        %620 = vmatpush1.msra.mxu0 0.0
        %621 = vmatprep.subr.mxu0 0.0
        %622 = vmatpush1.msra.mxu0 0.0
        %623 = vmatprep.subr.mxu0 0.0
        %624 = vmatpush1.msra.mxu0 0.0
        %625 = vmatprep.subr.mxu0 0.0
        %626 = vmatpush1.msra.mxu0 0.0
        %627 = vmatprep.subr.mxu0 0.0
        %628 = vmatpush1.msra.mxu0 0.0
        %629 = vmatprep.subr.mxu0 0.0
        %630 = vmatpush1.msra.mxu0 0.0
        %631 = vmatprep.subr.mxu0 0.0
        %632 = vmatpush1.msra.mxu0 0.0
        %633 = vmatprep.subr.mxu0 0.0
        %634 = vmatpush1.msra.mxu0 0.0
        %635 = vmatprep.subr.mxu0 0.0
        %636 = vmatpush1.msra.mxu0 0.0
        %637 = vmatprep.subr.mxu0 0.0
        %638 = vmatpush1.msra.mxu0 0.0
        %639 = vmatprep.subr.mxu0 0.0
        %640 = vmatpush1.msra.mxu0 0.0
        %641 = vmatprep.subr.mxu0 0.0
        %642 = vmatpush1.msra.mxu0 0.0
        %643 = vmatprep.subr.mxu0 0.0
        %644 = vmatpush1.msra.mxu0 0.0
        %645 = vmatprep.subr.mxu0 0.0
        %646 = vmatpush1.msra.mxu0 0.0
        %647 = vmatprep.subr.mxu0 0.0
        %648 = vmatpush1.msra.mxu0 0.0
        %649 = vmatprep.subr.mxu0 0.0
        %650 = vmatpush1.msra.mxu0 0.0
        %651 = vmatprep.subr.mxu0 0.0
        %652 = vmatpush1.msra.mxu0 0.0
        %653 = vmatprep.subr.mxu0 0.0
        %654 = vmatpush1.msra.mxu0 0.0
        %655 = vmatprep.mubr.f32.mxu0 0.0
        %656 = vmatmul.mubr.f32.gmra.mrb[0].mxu0 %v585
        %v657 = vpop.f32.mrb[0].mxu0
        %v658 = vadd.f32 0.0, %v657
        %v659 = vpop.f32.mrb[0].mxu0
        %v660 = vadd.f32 0.0, %v659
        %661 = vdwg.mxu0
        %v662 = vadd.f32 %v566, %v658
        %v663 = vadd.f32 %v567, %v660
        %v664 = vld [vmem:[%s195] sm:$0xff]
        %v665 = vld [vmem:[%s195 + $0x8] sm:$0xf]
        %s666 = scalar_lea.vmem %s1, 40
        %v667 = vld [vmem:[%s666] sm:$0xff]
        %v670 = vcombine.high %v664, %v664
        %671 = vrot.lane.b32.xlu0 %v664, 110
        %v672 = vpop.permute.xlu0 %671
        %673 = vrot.lane.b32.xlu0 %v670, 110
        %v674 = vpop.permute.xlu0 %673
        %675 = vrot.lane.b32.xlu0 %v665, 110
        %v676 = vpop.permute.xlu0 %675
        %vm677 = vcmask 900096
        %v678 = vsel %vm677, %v672, %v674
        %v679 = vsel %vm677, %v674, %v676
        %v681 = vsel %vm216, %v667, 0
        %v683 = vsel %vm220, %v678, 0
        %v685 = vsel %vm220, %v679, 0
        %687 = vmatprep.subr.mxu0 %v685
        %688 = vmatpush1.msra.mxu0 %v683
        %689 = vmatprep.subr.mxu0 0.0
        %690 = vmatpush1.msra.mxu0 0.0
        %691 = vmatprep.subr.mxu0 0.0
        %692 = vmatpush1.msra.mxu0 0.0
        %693 = vmatprep.subr.mxu0 0.0
        %694 = vmatpush1.msra.mxu0 0.0
        %695 = vmatprep.subr.mxu0 0.0
        %696 = vmatpush1.msra.mxu0 0.0
        %697 = vmatprep.subr.mxu0 0.0
        %698 = vmatpush1.msra.mxu0 0.0
        %699 = vmatprep.subr.mxu0 0.0
        %700 = vmatpush1.msra.mxu0 0.0
        %701 = vmatprep.subr.mxu0 0.0
        %702 = vmatpush1.msra.mxu0 0.0
        %703 = vmatprep.subr.mxu0 0.0
        %704 = vmatpush1.msra.mxu0 0.0
        %705 = vmatprep.subr.mxu0 0.0
        %706 = vmatpush1.msra.mxu0 0.0
        %707 = vmatprep.subr.mxu0 0.0
        %708 = vmatpush1.msra.mxu0 0.0
        %709 = vmatprep.subr.mxu0 0.0
        %710 = vmatpush1.msra.mxu0 0.0
        %711 = vmatprep.subr.mxu0 0.0
        %712 = vmatpush1.msra.mxu0 0.0
        %713 = vmatprep.subr.mxu0 0.0
        %714 = vmatpush1.msra.mxu0 0.0
        %715 = vmatprep.subr.mxu0 0.0
        %716 = vmatpush1.msra.mxu0 0.0
        %717 = vmatprep.subr.mxu0 0.0
        %718 = vmatpush1.msra.mxu0 0.0
        %719 = vmatprep.subr.mxu0 0.0
        %720 = vmatpush1.msra.mxu0 0.0
        %721 = vmatprep.subr.mxu0 0.0
        %722 = vmatpush1.msra.mxu0 0.0
        %723 = vmatprep.subr.mxu0 0.0
        %724 = vmatpush1.msra.mxu0 0.0
        %725 = vmatprep.subr.mxu0 0.0
        %726 = vmatpush1.msra.mxu0 0.0
        %727 = vmatprep.subr.mxu0 0.0
        %728 = vmatpush1.msra.mxu0 0.0
        %729 = vmatprep.subr.mxu0 0.0
        %730 = vmatpush1.msra.mxu0 0.0
        %731 = vmatprep.subr.mxu0 0.0
        %732 = vmatpush1.msra.mxu0 0.0
        %733 = vmatprep.subr.mxu0 0.0
        %734 = vmatpush1.msra.mxu0 0.0
        %735 = vmatprep.subr.mxu0 0.0
        %736 = vmatpush1.msra.mxu0 0.0
        %737 = vmatprep.subr.mxu0 0.0
        %738 = vmatpush1.msra.mxu0 0.0
        %739 = vmatprep.subr.mxu0 0.0
        %740 = vmatpush1.msra.mxu0 0.0
        %741 = vmatprep.subr.mxu0 0.0
        %742 = vmatpush1.msra.mxu0 0.0
        %743 = vmatprep.subr.mxu0 0.0
        %744 = vmatpush1.msra.mxu0 0.0
        %745 = vmatprep.subr.mxu0 0.0
        %746 = vmatpush1.msra.mxu0 0.0
        %747 = vmatprep.subr.mxu0 0.0
        %748 = vmatpush1.msra.mxu0 0.0
        %749 = vmatprep.subr.mxu0 0.0
        %750 = vmatpush1.msra.mxu0 0.0
        %751 = vmatprep.mubr.f32.mxu0 0.0
        %752 = vmatmul.mubr.f32.gmra.mrb[0].mxu0 %v681
        %v753 = vpop.f32.mrb[0].mxu0
        %v754 = vadd.f32 0.0, %v753
        %v755 = vpop.f32.mrb[0].mxu0
        %v756 = vadd.f32 0.0, %v755
        %757 = vdwg.mxu0
        %v758 = vadd.f32 %v662, %v754
        %v759 = vadd.f32 %v663, %v756
        %v760 = vld [vmem:[%s195] sm:$0xff]
        %v761 = vld [vmem:[%s195 + $0x8] sm:$0xf]
        %s762 = scalar_lea.vmem %s1, 48
        %v763 = vld [vmem:[%s762] sm:$0xff]
        %v766 = vcombine.high %v760, %v760
        %767 = vrot.lane.b32.xlu0 %v760, 96
        %v768 = vpop.permute.xlu0 %767
        %769 = vrot.lane.b32.xlu0 %v766, 96
        %v770 = vpop.permute.xlu0 %769
        %771 = vrot.lane.b32.xlu0 %v761, 96
        %v772 = vpop.permute.xlu0 %771
        %vm773 = vcmask 785408
        %v774 = vsel %vm773, %v768, %v770
        %v775 = vsel %vm773, %v770, %v772
        %v777 = vsel %vm216, %v763, 0
        %v779 = vsel %vm220, %v774, 0
        %v781 = vsel %vm220, %v775, 0
        %783 = vmatprep.subr.mxu0 %v781
        %784 = vmatpush1.msra.mxu0 %v779
        %785 = vmatprep.subr.mxu0 0.0
        %786 = vmatpush1.msra.mxu0 0.0
        %787 = vmatprep.subr.mxu0 0.0
        %788 = vmatpush1.msra.mxu0 0.0
        %789 = vmatprep.subr.mxu0 0.0
        %790 = vmatpush1.msra.mxu0 0.0
        %791 = vmatprep.subr.mxu0 0.0
        %792 = vmatpush1.msra.mxu0 0.0
        %793 = vmatprep.subr.mxu0 0.0
        %794 = vmatpush1.msra.mxu0 0.0
        %795 = vmatprep.subr.mxu0 0.0
        %796 = vmatpush1.msra.mxu0 0.0
        %797 = vmatprep.subr.mxu0 0.0
        %798 = vmatpush1.msra.mxu0 0.0
        %799 = vmatprep.subr.mxu0 0.0
        %800 = vmatpush1.msra.mxu0 0.0
        %801 = vmatprep.subr.mxu0 0.0
        %802 = vmatpush1.msra.mxu0 0.0
        %803 = vmatprep.subr.mxu0 0.0
        %804 = vmatpush1.msra.mxu0 0.0
        %805 = vmatprep.subr.mxu0 0.0
        %806 = vmatpush1.msra.mxu0 0.0
        %807 = vmatprep.subr.mxu0 0.0
        %808 = vmatpush1.msra.mxu0 0.0
        %809 = vmatprep.subr.mxu0 0.0
        %810 = vmatpush1.msra.mxu0 0.0
        %811 = vmatprep.subr.mxu0 0.0
        %812 = vmatpush1.msra.mxu0 0.0
        %813 = vmatprep.subr.mxu0 0.0
        %814 = vmatpush1.msra.mxu0 0.0
        %815 = vmatprep.subr.mxu0 0.0
        %816 = vmatpush1.msra.mxu0 0.0
        %817 = vmatprep.subr.mxu0 0.0
        %818 = vmatpush1.msra.mxu0 0.0
        %819 = vmatprep.subr.mxu0 0.0
        %820 = vmatpush1.msra.mxu0 0.0
        %821 = vmatprep.subr.mxu0 0.0
        %822 = vmatpush1.msra.mxu0 0.0
        %823 = vmatprep.subr.mxu0 0.0
        %824 = vmatpush1.msra.mxu0 0.0
        %825 = vmatprep.subr.mxu0 0.0
        %826 = vmatpush1.msra.mxu0 0.0
        %827 = vmatprep.subr.mxu0 0.0
        %828 = vmatpush1.msra.mxu0 0.0
        %829 = vmatprep.subr.mxu0 0.0
        %830 = vmatpush1.msra.mxu0 0.0
        %831 = vmatprep.subr.mxu0 0.0
        %832 = vmatpush1.msra.mxu0 0.0
        %833 = vmatprep.subr.mxu0 0.0
        %834 = vmatpush1.msra.mxu0 0.0
        %835 = vmatprep.subr.mxu0 0.0
        %836 = vmatpush1.msra.mxu0 0.0
        %837 = vmatprep.subr.mxu0 0.0
        %838 = vmatpush1.msra.mxu0 0.0
        %839 = vmatprep.subr.mxu0 0.0
        %840 = vmatpush1.msra.mxu0 0.0
        %841 = vmatprep.subr.mxu0 0.0
        %842 = vmatpush1.msra.mxu0 0.0
        %843 = vmatprep.subr.mxu0 0.0
        %844 = vmatpush1.msra.mxu0 0.0
        %845 = vmatprep.subr.mxu0 0.0
        %846 = vmatpush1.msra.mxu0 0.0
        %847 = vmatprep.mubr.f32.mxu0 0.0
        %848 = vmatmul.mubr.f32.gmra.mrb[0].mxu0 %v777
        %v849 = vpop.f32.mrb[0].mxu0
        %v850 = vadd.f32 0.0, %v849
        %v851 = vpop.f32.mrb[0].mxu0
        %v852 = vadd.f32 0.0, %v851
        %853 = vdwg.mxu0
        %v854 = vadd.f32 %v758, %v850
        %v855 = vadd.f32 %v759, %v852
        %v856 = vld [vmem:[%s195] sm:$0xff]
        %v857 = vld [vmem:[%s195 + $0x8] sm:$0xf]
        %s858 = scalar_lea.vmem %s1, 56
        %v859 = vld [vmem:[%s858] sm:$0xff]
        %v862 = vcombine.high %v856, %v856
        %863 = vrot.lane.b32.xlu0 %v856, 95
        %v864 = vpop.permute.xlu0 %863
        %865 = vrot.lane.b32.xlu0 %v862, 95
        %v866 = vpop.permute.xlu0 %865
        %867 = vrot.lane.b32.xlu0 %v857, 95
        %v868 = vpop.permute.xlu0 %867
        %vm869 = vcmask 777216
        %v870 = vsel %vm869, %v864, %v866
        %v871 = vsel %vm869, %v866, %v868
        %v873 = vsel %vm216, %v859, 0
        %v875 = vsel %vm220, %v870, 0
        %v877 = vsel %vm220, %v871, 0
        %879 = vmatprep.subr.mxu0 %v877
        %880 = vmatpush1.msra.mxu0 %v875
        %881 = vmatprep.subr.mxu0 0.0
        %882 = vmatpush1.msra.mxu0 0.0
        %883 = vmatprep.subr.mxu0 0.0
        %884 = vmatpush1.msra.mxu0 0.0
        %885 = vmatprep.subr.mxu0 0.0
        %886 = vmatpush1.msra.mxu0 0.0
        %887 = vmatprep.subr.mxu0 0.0
        %888 = vmatpush1.msra.mxu0 0.0
        %889 = vmatprep.subr.mxu0 0.0
        %890 = vmatpush1.msra.mxu0 0.0
        %891 = vmatprep.subr.mxu0 0.0
        %892 = vmatpush1.msra.mxu0 0.0
        %893 = vmatprep.subr.mxu0 0.0
        %894 = vmatpush1.msra.mxu0 0.0
        %895 = vmatprep.subr.mxu0 0.0
        %896 = vmatpush1.msra.mxu0 0.0
        %897 = vmatprep.subr.mxu0 0.0
        %898 = vmatpush1.msra.mxu0 0.0
        %899 = vmatprep.subr.mxu0 0.0
        %900 = vmatpush1.msra.mxu0 0.0
        %901 = vmatprep.subr.mxu0 0.0
        %902 = vmatpush1.msra.mxu0 0.0
        %903 = vmatprep.subr.mxu0 0.0
        %904 = vmatpush1.msra.mxu0 0.0
        %905 = vmatprep.subr.mxu0 0.0
        %906 = vmatpush1.msra.mxu0 0.0
        %907 = vmatprep.subr.mxu0 0.0
        %908 = vmatpush1.msra.mxu0 0.0
        %909 = vmatprep.subr.mxu0 0.0
        %910 = vmatpush1.msra.mxu0 0.0
        %911 = vmatprep.subr.mxu0 0.0
        %912 = vmatpush1.msra.mxu0 0.0
        %913 = vmatprep.subr.mxu0 0.0
        %914 = vmatpush1.msra.mxu0 0.0
        %915 = vmatprep.subr.mxu0 0.0
        %916 = vmatpush1.msra.mxu0 0.0
        %917 = vmatprep.subr.mxu0 0.0
        %918 = vmatpush1.msra.mxu0 0.0
        %919 = vmatprep.subr.mxu0 0.0
        %920 = vmatpush1.msra.mxu0 0.0
        %921 = vmatprep.subr.mxu0 0.0
        %922 = vmatpush1.msra.mxu0 0.0
        %923 = vmatprep.subr.mxu0 0.0
        %924 = vmatpush1.msra.mxu0 0.0
        %925 = vmatprep.subr.mxu0 0.0
        %926 = vmatpush1.msra.mxu0 0.0
        %927 = vmatprep.subr.mxu0 0.0
        %928 = vmatpush1.msra.mxu0 0.0
        %929 = vmatprep.subr.mxu0 0.0
        %930 = vmatpush1.msra.mxu0 0.0
        %931 = vmatprep.subr.mxu0 0.0
        %932 = vmatpush1.msra.mxu0 0.0
        %933 = vmatprep.subr.mxu0 0.0
        %934 = vmatpush1.msra.mxu0 0.0
        %935 = vmatprep.subr.mxu0 0.0
        %936 = vmatpush1.msra.mxu0 0.0
        %937 = vmatprep.subr.mxu0 0.0
        %938 = vmatpush1.msra.mxu0 0.0
        %939 = vmatprep.subr.mxu0 0.0
        %940 = vmatpush1.msra.mxu0 0.0
        %941 = vmatprep.subr.mxu0 0.0
        %942 = vmatpush1.msra.mxu0 0.0
        %943 = vmatprep.mubr.f32.mxu0 0.0
        %944 = vmatmul.mubr.f32.gmra.mrb[0].mxu0 %v873
        %v945 = vpop.f32.mrb[0].mxu0
        %v946 = vadd.f32 0.0, %v945
        %v947 = vpop.f32.mrb[0].mxu0
        %v948 = vadd.f32 0.0, %v947
        %949 = vdwg.mxu0
        %v950 = vadd.f32 %v854, %v946
        %v951 = vadd.f32 %v855, %v948
        %v952 = vld [vmem:[%s195] sm:$0xff]
        %v953 = vld [vmem:[%s195 + $0x8] sm:$0xf]
        %s954 = scalar_lea.vmem %s1, 64
        %v955 = vld [vmem:[%s954] sm:$0xff]
        %v958 = vcombine.high %v952, %v952
        %959 = vrot.lane.b32.xlu0 %v952, 94
        %v960 = vpop.permute.xlu0 %959
        %961 = vrot.lane.b32.xlu0 %v958, 94
        %v962 = vpop.permute.xlu0 %961
        %963 = vrot.lane.b32.xlu0 %v953, 94
        %v964 = vpop.permute.xlu0 %963
        %vm965 = vcmask 769024
        %v966 = vsel %vm965, %v960, %v962
        %v967 = vsel %vm965, %v962, %v964
        %v969 = vsel %vm216, %v955, 0
        %v971 = vsel %vm220, %v966, 0
        %v973 = vsel %vm220, %v967, 0
        %975 = vmatprep.subr.mxu0 %v973
        %976 = vmatpush1.msra.mxu0 %v971
        %977 = vmatprep.subr.mxu0 0.0
        %978 = vmatpush1.msra.mxu0 0.0
        %979 = vmatprep.subr.mxu0 0.0
        %980 = vmatpush1.msra.mxu0 0.0
        %981 = vmatprep.subr.mxu0 0.0
        %982 = vmatpush1.msra.mxu0 0.0
        %983 = vmatprep.subr.mxu0 0.0
        %984 = vmatpush1.msra.mxu0 0.0
        %985 = vmatprep.subr.mxu0 0.0
        %986 = vmatpush1.msra.mxu0 0.0
        %987 = vmatprep.subr.mxu0 0.0
        %988 = vmatpush1.msra.mxu0 0.0
        %989 = vmatprep.subr.mxu0 0.0
        %990 = vmatpush1.msra.mxu0 0.0
        %991 = vmatprep.subr.mxu0 0.0
        %992 = vmatpush1.msra.mxu0 0.0
        %993 = vmatprep.subr.mxu0 0.0
        %994 = vmatpush1.msra.mxu0 0.0
        %995 = vmatprep.subr.mxu0 0.0
        %996 = vmatpush1.msra.mxu0 0.0
        %997 = vmatprep.subr.mxu0 0.0
        %998 = vmatpush1.msra.mxu0 0.0
        %999 = vmatprep.subr.mxu0 0.0
        %1000 = vmatpush1.msra.mxu0 0.0
        %1001 = vmatprep.subr.mxu0 0.0
        %1002 = vmatpush1.msra.mxu0 0.0
        %1003 = vmatprep.subr.mxu0 0.0
        %1004 = vmatpush1.msra.mxu0 0.0
        %1005 = vmatprep.subr.mxu0 0.0
        %1006 = vmatpush1.msra.mxu0 0.0
        %1007 = vmatprep.subr.mxu0 0.0
        %1008 = vmatpush1.msra.mxu0 0.0
        %1009 = vmatprep.subr.mxu0 0.0
        %1010 = vmatpush1.msra.mxu0 0.0
        %1011 = vmatprep.subr.mxu0 0.0
        %1012 = vmatpush1.msra.mxu0 0.0
        %1013 = vmatprep.subr.mxu0 0.0
        %1014 = vmatpush1.msra.mxu0 0.0
        %1015 = vmatprep.subr.mxu0 0.0
        %1016 = vmatpush1.msra.mxu0 0.0
        %1017 = vmatprep.subr.mxu0 0.0
        %1018 = vmatpush1.msra.mxu0 0.0
        %1019 = vmatprep.subr.mxu0 0.0
        %1020 = vmatpush1.msra.mxu0 0.0
        %1021 = vmatprep.subr.mxu0 0.0
        %1022 = vmatpush1.msra.mxu0 0.0
        %1023 = vmatprep.subr.mxu0 0.0
        %1024 = vmatpush1.msra.mxu0 0.0
        %1025 = vmatprep.subr.mxu0 0.0
        %1026 = vmatpush1.msra.mxu0 0.0
        %1027 = vmatprep.subr.mxu0 0.0
        %1028 = vmatpush1.msra.mxu0 0.0
        %1029 = vmatprep.subr.mxu0 0.0
        %1030 = vmatpush1.msra.mxu0 0.0
        %1031 = vmatprep.subr.mxu0 0.0
        %1032 = vmatpush1.msra.mxu0 0.0
        %1033 = vmatprep.subr.mxu0 0.0
        %1034 = vmatpush1.msra.mxu0 0.0
        %1035 = vmatprep.subr.mxu0 0.0
        %1036 = vmatpush1.msra.mxu0 0.0
        %1037 = vmatprep.subr.mxu0 0.0
        %1038 = vmatpush1.msra.mxu0 0.0
        %1039 = vmatprep.mubr.f32.mxu0 0.0
        %1040 = vmatmul.mubr.f32.gmra.mrb[0].mxu0 %v969
        %v1041 = vpop.f32.mrb[0].mxu0
        %v1042 = vadd.f32 0.0, %v1041
        %v1043 = vpop.f32.mrb[0].mxu0
        %v1044 = vadd.f32 0.0, %v1043
        %1045 = vdwg.mxu0
        %v1046 = vadd.f32 %v950, %v1042
        %v1047 = vadd.f32 %v951, %v1044
        %1049 = vset.pattern.permute.xlu0 0
        %1050 = vperm.xlu0 %1049, %v196
        %v1051 = vpop.permute.xlu0 %1050
        %v1053 = vmul.f32 %v1046, %v1051
        %v1054 = vmul.f32 %v1047, %v1051
        %1056 = vset.pattern.permute.xlu0 0
        %1057 = vperm.xlu0 %1056, %v197
        %v1058 = vpop.permute.xlu0 %1057
        %v1060 = vadd.f32 %v1053, %v1058
        %v1061 = vadd.f32 %v1054, %v1058
        %v1062 = vxor.u32 %v1060, 2147483648
        %v1063 = vxor.u32 %v1061, 2147483648
        %v1064 = vmul.f32 %v1062, 1.442695
        %v1065 = vpow.pop %v1064
        %v1066 = vmul.f32 %v1063, 1.442695
        %v1067 = vpow.pop %v1066
        %v1068 = vadd.f32 %v1065, 1.0
        %v1069 = vadd.f32 %v1067, 1.0
        %v1070 = vrcp.pop %v1068
        %v1071 = vmul.f32 1.0, %v1070
        %v1072 = vrcp.pop %v1069
        %v1073 = vmul.f32 1.0, %v1072
        %v1074 = vmul.f32 %v1060, %v1071
        %v1075 = vmul.f32 %v1061, %v1073
        %1076 = vst [vmem:[%s190] sm:$0xff] %v1074
        %1077 = vst [vmem:[%s190 + $0x8] sm:$0xff] %v1075
        %s1078 = sand.u32 %s115, 1
        %s1079 = scalar_lea.sflag [#allocation3], %s1078
        %s1080 = sand.u32 %s115, 1
        %s1081 = smul.addr %s1080, 16
        %s1082 = scalar_lea.vmem [#allocation2], %s1081
        // Predicated region
        $region37: #{tpu_custom_call.1} parent=35 // pred_check
          %p1083 = pneg %p125
        $region38: #{tpu_custom_call.1} parent=35 // pred_check_branch
          %1085 = sbr.rel (%p1083) target = $region40
        $region39: #{tpu_custom_call.1} parent=35 // pred_region
          %s1087 = ssub.s32 256, 256
          %1088 = vsyncadd %s1079, %s1087
          %s1089 = smul.addr %s18, 2
          %s1090 = smul.addr %s1089, 128
          %s1091 = scalar_lea.hbm %s4, %s1090
          %s1093 = sshll.u32 %s1082, 4
          %s1094 = int_to_ptr.vmem [resolvable:$true] %s1093
          %1096 = dma.vmem_to_hbm [thread:$0]  %s1094, 256, %s1091, %s1079
        $region40: #{tpu_custom_call.1} parent=35 // pred_fallthru
          _
      $region36: #{tpu_custom_call.1} parent=5 // pred_fallthru
        _
      %p1097 = scmp.le.s32.totalorder 2, %s13
      // Predicated region
      $region41: #{tpu_custom_call.1} parent=5 // pred_check
        %p1098 = pneg %p1097
      $region42: #{tpu_custom_call.1} parent=5 // pred_check_branch
        %1100 = sbr.rel (%p1098) target = $region44
      $region43: #{tpu_custom_call.1} parent=5 // pred_region
        %s1101 = ssub.s32 %s13, 2
        // Predicated region
        $region45: #{tpu_custom_call.1} parent=43 // pred_check
          %p1102 = pneg %p131
        $region46: #{tpu_custom_call.1} parent=43 // pred_check_branch
          %1104 = sbr.rel (%p1102) target = $region48
        $region47: #{tpu_custom_call.1} parent=43 // pred_region
          %s1105 = sand.u32 %s116, 1
          %s1106 = scalar_lea.sflag [#allocation3], %s1105
          %s1107 = sand.u32 %s116, 1
          %s1108 = smul.addr %s1107, 16
          %s1109 = scalar_lea.vmem [#allocation2], %s1108
          %1110 = dma.done %s1106, 256
        $region48: #{tpu_custom_call.1} parent=43 // pred_fallthru
          _
      $region44: #{tpu_custom_call.1} parent=5 // pred_fallthru
        _
    $region6: #{tpu_custom_call.1} parent=1 // loop_footer
      %s17 = sadd.s32 1, %s13
    $region7: #{tpu_custom_call.1} parent=1 // loop_footer_branch
      %12 = sbr.rel target = $region3
    $region8: #{tpu_custom_call.1} parent=1 // loop_exit
      _
    %1111 = vsyncpa [#allocation3], 1
    %s1112 = scalar_lea.sflag [#allocation3], 1
    %1113 = vsyncpa %s1112, 1

</llo_original>
